<compile_context>
chip_gen: v5e
topology: v5e:2x2
jax: 0.10.0
libtpu: 0.0.40
codegen_flags: <defaults>
</compile_context>

<pallas_src>
import functools

import jax
import jax.numpy as jnp
from jax import lax
from jax.experimental import pallas as pl
from jax.experimental.pallas import tpu as pltpu


# ----------------------------- Pallas kernel -----------------------------

def _sa_mlp_maxpool_kernel(ns, tile_p, g_ref, w1_ref, b1_ref, w2_ref, b2_ref, o_ref):
    """Shared-MLP (two 1x1 convs + ReLU) + max-pool over the nsample axis.

    Neighbours are pre-flattened onto the lane axis by the wrapper, so each layer is a single
    wide matmul; the max-pool is a pairwise tree over static 128-aligned lane slices.

      g_ref  : (Cin, ns*TILE_P)  f32|bf16   lanes = [neigh 0 | neigh 1 | ...] x TILE_P points
      w1_ref : (H1, Cin)  same dtype        b1_ref : (H1, 1) f32
      w2_ref : (H2, H1)   same dtype        b2_ref : (H2, 1) f32
      o_ref  : (H2, TILE_P) f32             -> directly the PyTorch (B, C_out, npoint) layout
    """
    g = g_ref[...]
    h = jnp.dot(w1_ref[...], g, preferred_element_type=jnp.float32) + b1_ref[...]
    h = jnp.maximum(h, 0.0)                                       # ReLU in f32 (v5e-safe)
    y = jnp.dot(w2_ref[...], h.astype(w2_ref.dtype),
                preferred_element_type=jnp.float32) + b2_ref[...]
    y = jnp.maximum(y, 0.0)                                       # (H2, ns*TILE_P) f32

    # max over neighbours: static 128-aligned lane slices, log-depth tree (short VALU dep chain)
    slabs = [y[:, s * tile_p:(s + 1) * tile_p] for s in range(ns)]
    while len(slabs) > 1:
        nxt = [jnp.maximum(slabs[i], slabs[i + 1]) for i in range(0, len(slabs) - 1, 2)]
        if len(slabs) % 2:
            nxt.append(slabs[-1])
        slabs = nxt
    o_ref[...] = slabs[0].astype(o_ref.dtype)


def _choose_tile_p(npoint, ns, cin_pad, h1, h2, itemsize, batch):
    """Lane tile over the point axis: multiple of 128, VMEM-budget bound, >=2 grid steps."""
    # per point-lane VMEM bytes in flight: double-buffered grouped slab + f32 intermediates
    per_lane = ns * (2 * cin_pad * itemsize + (h1 + h2) * 4) + 2 * h2 * 4
    budget = 24 * 1024 * 1024          # headroom inside the 40 MiB scoped limit (v7x: 64 MiB phys)
    p128 = max(128, ((npoint + 127) // 128) * 128)
    tile_p = 128
    for cand in (512, 256):
        if cand <= p128 and cand * per_lane <= budget:
            tile_p = cand
            break
    # guarantee >=2 parallel grid steps so both v7x TensorCores get work
    while tile_p > 128 and batch * pl.cdiv(npoint, tile_p) < 2:
        tile_p //= 2
    return tile_p


def shared_mlp_maxpool(grouped, w1, b1, w2, b2):
    """grouped: (B, P, ns, Cin) f32; w1:(Cin,H1) b1:(1,H1) w2:(H1,H2) b2:(1,H2).

    Returns (B, H2, P) f32 (channels-first, PyTorch conv layout)."""
    B, P, ns, cin = grouped.shape
    h1 = w1.shape[1]
    h2 = w2.shape[1]

    # bf16 only pays once Cin reaches the 16-row sublane packing; below that it moves the same
    # padded bytes and only costs precision on the radius-centred xyz channels -> keep f32.
    use_bf16 = cin >= 16
    gdtype = jnp.bfloat16 if use_bf16 else jnp.float32
    itemsize = 2 if use_bf16 else 4
    sub = 16 if use_bf16 else 8
    cin_pad = ((cin + sub - 1) // sub) * sub

    tile_p = _choose_tile_p(P, ns, cin_pad, h1, h2, itemsize, B)
    num_tiles = int(pl.cdiv(P, tile_p))
    p_pad = num_tiles * tile_p

    # layout plumbing (XLA side): (B,P,ns,Cin) -> (B, nt, Cin, ns*TILE_P) lane-dense,
    # neighbours flattened onto lanes so the kernel never relayouts.
    g = grouped
    if p_pad != P:
        g = jnp.pad(g, ((0, 0), (0, p_pad - P), (0, 0), (0, 0)))
    g = g.reshape(B, num_tiles, tile_p, ns, cin)
    g = jnp.transpose(g, (0, 1, 4, 3, 2)).reshape(B, num_tiles, cin, ns * tile_p)
    g = g.astype(gdtype)

    w1t = jnp.transpose(w1).astype(gdtype)                 # (H1, Cin) channels-first MXU operand
    w2t = jnp.transpose(w2).astype(gdtype)                 # (H2, H1)
    b1c = jnp.reshape(b1, (-1, 1)).astype(jnp.float32)
    b2c = jnp.reshape(b2, (-1, 1)).astype(jnp.float32)

    flops = 2 * B * p_pad * ns * (cin * h1 + h1 * h2)
    bytes_accessed = (g.size * itemsize + B * h2 * p_pad * 4
                      + (w1t.size + w2t.size) * itemsize + (b1c.size + b2c.size) * 4)

    kernel = functools.partial(_sa_mlp_maxpool_kernel, ns, tile_p)
    out = pl.pallas_call(
        kernel,
        out_shape=jax.ShapeDtypeStruct((B, h2, p_pad), jnp.float32),
        grid=(B, num_tiles),
        in_specs=[
            pl.BlockSpec((None, None, cin, ns * tile_p), lambda b, p: (b, p, 0, 0)),
            pl.BlockSpec((h1, cin), lambda b, p: (0, 0)),
            pl.BlockSpec((h1, 1), lambda b, p: (0, 0)),
            pl.BlockSpec((h2, h1), lambda b, p: (0, 0)),
            pl.BlockSpec((h2, 1), lambda b, p: (0, 0)),
        ],
        out_specs=pl.BlockSpec((None, h2, tile_p), lambda b, p: (b, 0, p)),
        compiler_params=pltpu.CompilerParams(
            dimension_semantics=("parallel", "parallel"),
            vmem_limit_bytes=40 * 1024 * 1024,
        ),
        cost_estimate=pl.CostEstimate(
            flops=int(flops), transcendentals=0, bytes_accessed=int(bytes_accessed)),
    )(g, w1t, b1c, w2t, b2c)
    return out[:, :, :P]


# ----------------------------- plain-JAX glue -----------------------------

def _gather_points(arr, idx):
    """arr: (B, N, D), idx: (B, ...) int -> (B, ..., D)."""
    return jax.vmap(lambda a, i: a[i])(arr, idx)


def _ball_query_and_group(xyz, new_xyz, feats_nlc, radius, nsample):
    """QueryAndGroup(use_xyz=True) semantics.

    xyz: (B, N, 3); new_xyz: (B, npoint, 3); feats_nlc: (B, N, C)
    returns grouped (B, npoint, nsample, 3 + C) float32
    """
    B, N, _ = xyz.shape
    # TODO(synk): tile over npoint (or move into a small Pallas kernel that emits idx) for large N;
    # the (B, npoint, N) d2 intermediate dominates HBM once N reaches 16K-64K points.
    d2 = jnp.sum((new_xyz[:, :, None, :] - xyz[:, None, :, :]) ** 2, axis=-1)   # (B, P, N)
    valid = d2 < radius * radius
    ar = jnp.arange(N, dtype=jnp.int32)
    keys = jnp.where(valid, ar[None, None, :], N + ar[None, None, :])
    # first `nsample` in-radius points in index order == nsample smallest keys (top_k, no argsort)
    neg_vals, sel = lax.top_k(-keys, nsample)                                   # (B, P, ns)
    sel = sel.astype(jnp.int32)
    sel_ok = (-neg_vals) < N
    first = jnp.where(sel_ok[..., :1], sel[..., :1], 0)
    # fill-with-first (matches CUDA ball_query; if no point in radius, falls back to index 0)
    idx_g = jnp.where(sel_ok, sel, first)

    grouped_xyz = _gather_points(xyz, idx_g) - new_xyz[:, :, None, :]           # (B, P, ns, 3)
    grouped_feats = _gather_points(feats_nlc, idx_g)                            # (B, P, ns, C)
    return jnp.concatenate([grouped_xyz, grouped_feats], axis=-1)               # (B, P, ns, 3+C)


def pointnet_sa_forward(xyz, features_cf, npoint, params, keep_first_half=True):
    """Forward of _PointnetSAModuleBase (sample_method=None, target_feature=None).

    xyz:         (B, N, 3)
    features_cf: (B, C, N)  channel-first
    returns (new_xyz (B,npoint,3), new_features (B, sum C_out, npoint), idx (B,npoint) int32, scores=None)
    """
    B, N, _ = xyz.shape
    feats_nlc = jnp.transpose(features_cf, (0, 2, 1))            # (B, N, C)

    # sample_method is None, keep_first_half branch
    if keep_first_half:
        half = npoint // 2
        idx0 = jnp.arange(half, dtype=jnp.int32)
        idx1 = jnp.arange(npoint - half, dtype=jnp.int32) + N // 2
        idx = jnp.tile(jnp.concatenate([idx0, idx1])[None, :], (B, 1))
    else:
        idx = jnp.tile(jnp.arange(npoint, dtype=jnp.int32)[None, :], (B, 1))
    scores = None

    # gather_points(xyz_flipped, idx).transpose(1, 2)
    new_xyz = _gather_points(xyz, idx)                           # (B, npoint, 3)

    new_features_list = []
    for scale in params["scales"]:
        grouped = _ball_query_and_group(
            xyz, new_xyz, feats_nlc, scale["radius"], scale["nsample"])   # (B, P, ns, 3+C)
        out = shared_mlp_maxpool(grouped, scale["w1"], scale["b1"],
                                 scale["w2"], scale["b2"])                # (B, C_out, npoint)
        new_features_list.append(out)

    # TODO(synk): write each scale directly into its channel slice of one (B, sum C_out, p_pad)
    # buffer via the out_specs index_map to skip this (small) concat copy.
    new_features = jnp.concatenate(new_features_list, axis=1)
    return new_xyz, new_features, idx, scores


# TODO(synk): the target_feature branch (AdaptiveCross fusion, classify_mlp_phase2 + topk) and the
# 'fps'/'ffps'/'rand' sample methods are not translated (AdaptiveCross/Points_Sampler are undefined
# in the reference; this instantiation uses sample_method=None, target_feature=None).
# CosineSimilarity is unused by forward; Dropout is a no-op at inference. BatchNorm of the shared
# MLP is folded to identity (default init) — trained BN params must be folded into w/b before use.


# ------------------- pure-JAX reference (for the self-test) -------------------

def _reference_mlp_maxpool(g, w1, b1, w2, b2):
    """g: (B, P, ns, Cin) f32 -> (B, H2, P) f32, all-f32 math."""
    h = jnp.einsum("bpsc,ch->bpsh", g, w1) + b1[0]
    h = jnp.maximum(h, 0.0)
    h = jnp.einsum("bpsh,hk->bpsk", h, w2) + b2[0]
    h = jnp.maximum(h, 0.0)
    return jnp.transpose(jnp.max(h, axis=2), (0, 2, 1))         # (B, H2, P)


if __name__ == "__main__":
    key = jax.random.PRNGKey(0)
    B, N, C = 2, 16, 4
    npoint = 8
    cin = 3 + C  # use_xyz=True

    ks = jax.random.split(key, 10)
    xyz = jax.random.uniform(ks[0], (B, N, 3), dtype=jnp.float32)
    features = jax.random.normal(ks[1], (B, C, N), dtype=jnp.float32)

    def mk_mlp(kw1, kb1, kw2, kb2, cin_, h1, h2):
        return dict(
            w1=0.1 * jax.random.normal(kw1, (cin_, h1), dtype=jnp.float32),
            b1=0.05 * jax.random.normal(kb1, (1, h1), dtype=jnp.float32),
            w2=0.1 * jax.random.normal(kw2, (h1, h2), dtype=jnp.float32),
            b2=0.05 * jax.random.normal(kb2, (1, h2), dtype=jnp.float32),
        )

    params = {
        "scales": [
            dict(radius=0.6, nsample=4, **mk_mlp(ks[2], ks[3], ks[4], ks[5], cin, 16, 32)),
            dict(radius=1.2, nsample=8, **mk_mlp(ks[6], ks[7], ks[8], ks[9], cin, 16, 32)),
        ]
    }

    new_xyz, new_features, idx, scores = pointnet_sa_forward(xyz, features, npoint, params)
    jax.block_until_ready((new_xyz, new_features, idx))

    assert new_xyz.shape == (B, npoint, 3)
    assert new_features.shape == (B, 32 + 32, npoint)
    assert idx.shape == (B, npoint)

    # pure-JAX f32 reference
    feats_nlc = jnp.transpose(features, (0, 2, 1))
    refs = []
    for scale in params["scales"]:
        g = _ball_query_and_group(xyz, new_xyz, feats_nlc, scale["radius"], scale["nsample"])
        refs.append(_reference_mlp_maxpool(g, scale["w1"], scale["b1"], scale["w2"], scale["b2"]))
    ref = jnp.concatenate(refs, axis=1)
    err = float(jnp.max(jnp.abs(new_features - ref)))
    assert err < 0.05, f"max abs err vs f32 reference: {err}"

    print("KERNEL_OK")
</pallas_src>

<mosaic_0001>
module attributes {stable_mosaic.version = 11 : i64} {
  func.func @_sa_mlp_maxpool_kernel(%arg0: i32, %arg1: i32, %arg2: memref<1x1x7x512xf32, #tpu.memory_space<vmem>>, %arg3: memref<16x7xf32, #tpu.memory_space<vmem>>, %arg4: memref<16x1xf32, #tpu.memory_space<vmem>>, %arg5: memref<32x16xf32, #tpu.memory_space<vmem>>, %arg6: memref<32x1xf32, #tpu.memory_space<vmem>>, %arg7: memref<1x32x128xf32, #tpu.memory_space<vmem>>) attributes {dimension_semantics = [#tpu.dimension_semantics<parallel>, #tpu.dimension_semantics<parallel>], iteration_bounds = array<i64: 2, 1>, scalar_prefetch = 0 : i64, scratch_operands = 0 : i64, tpu.core_type = #tpu.core_type<tc>, window_params = [{transform_indices = @transform_0, window_bounds = array<i64: 1, 1, 7, 512>}, {pipeline_mode = #tpu.pipeline_mode<synchronous>, transform_indices = @transform_1, window_bounds = array<i64: 16, 7>}, {pipeline_mode = #tpu.pipeline_mode<synchronous>, transform_indices = @transform_2, window_bounds = array<i64: 16, 1>}, {pipeline_mode = #tpu.pipeline_mode<synchronous>, transform_indices = @transform_3, window_bounds = array<i64: 32, 16>}, {pipeline_mode = #tpu.pipeline_mode<synchronous>, transform_indices = @transform_4, window_bounds = array<i64: 32, 1>}, {transform_indices = @transform_5, window_bounds = array<i64: 1, 32, 128>}]} {
    %c0 = arith.constant 0 : index
    %c0_0 = arith.constant 0 : index
    %c0_1 = arith.constant 0 : index
    %c0_2 = arith.constant 0 : index
    %0 = vector.load %arg2[%c0, %c0_0, %c0_1, %c0_2] : memref<1x1x7x512xf32, #tpu.memory_space<vmem>>, vector<1x1x7x512xf32>
    %1 = vector.shape_cast %0 : vector<1x1x7x512xf32> to vector<7x512xf32>
    %c0_3 = arith.constant 0 : index
    %c0_4 = arith.constant 0 : index
    %2 = vector.load %arg3[%c0_3, %c0_4] : memref<16x7xf32, #tpu.memory_space<vmem>>, vector<16x7xf32>
    %cst = arith.constant dense<0.000000e+00> : vector<16x512xf32>
    %3 = tpu.matmul %2, %1, %cst {dimension_numbers = #tpu.dot_dimension_numbers<[1], [0], [0], [1], [0, 0, 1, 1], [], []>} : vector<16x7xf32>, vector<7x512xf32>, vector<16x512xf32> -> vector<16x512xf32>
    %c0_5 = arith.constant 0 : index
    %c0_6 = arith.constant 0 : index
    %4 = vector.load %arg4[%c0_5, %c0_6] : memref<16x1xf32, #tpu.memory_space<vmem>>, vector<16x1xf32>
    %5 = vector.broadcast %4 : vector<16x1xf32> to vector<16x512xf32>
    %6 = arith.addf %3, %5 : vector<16x512xf32>
    %cst_7 = arith.constant 0.000000e+00 : f32
    %7 = vector.broadcast %cst_7 : f32 to vector<16x512xf32>
    %8 = arith.maximumf %6, %7 : vector<16x512xf32>
    %c0_8 = arith.constant 0 : index
    %c0_9 = arith.constant 0 : index
    %9 = vector.load %arg5[%c0_8, %c0_9] : memref<32x16xf32, #tpu.memory_space<vmem>>, vector<32x16xf32>
    %cst_10 = arith.constant dense<0.000000e+00> : vector<32x512xf32>
    %10 = tpu.matmul %9, %8, %cst_10 {dimension_numbers = #tpu.dot_dimension_numbers<[1], [0], [0], [1], [0, 0, 1, 1], [], []>} : vector<32x16xf32>, vector<16x512xf32>, vector<32x512xf32> -> vector<32x512xf32>
    %c0_11 = arith.constant 0 : index
    %c0_12 = arith.constant 0 : index
    %11 = vector.load %arg6[%c0_11, %c0_12] : memref<32x1xf32, #tpu.memory_space<vmem>>, vector<32x1xf32>
    %12 = vector.broadcast %11 : vector<32x1xf32> to vector<32x512xf32>
    %13 = arith.addf %10, %12 : vector<32x512xf32>
    %cst_13 = arith.constant 0.000000e+00 : f32
    %14 = vector.broadcast %cst_13 : f32 to vector<32x512xf32>
    %15 = arith.maximumf %13, %14 : vector<32x512xf32>
    %16 = vector.extract_strided_slice %15 {offsets = [0, 0], sizes = [32, 128], strides = [1, 1]} : vector<32x512xf32> to vector<32x128xf32>
    %17 = vector.extract_strided_slice %15 {offsets = [0, 128], sizes = [32, 128], strides = [1, 1]} : vector<32x512xf32> to vector<32x128xf32>
    %18 = vector.extract_strided_slice %15 {offsets = [0, 256], sizes = [32, 128], strides = [1, 1]} : vector<32x512xf32> to vector<32x128xf32>
    %19 = vector.extract_strided_slice %15 {offsets = [0, 384], sizes = [32, 128], strides = [1, 1]} : vector<32x512xf32> to vector<32x128xf32>
    %20 = arith.maximumf %16, %17 : vector<32x128xf32>
    %21 = arith.maximumf %18, %19 : vector<32x128xf32>
    %22 = arith.maximumf %20, %21 : vector<32x128xf32>
    %c0_14 = arith.constant 0 : index
    %c0_15 = arith.constant 0 : index
    %c0_16 = arith.constant 0 : index
    %23 = vector.load %arg7[%c0_14, %c0_15, %c0_16] : memref<1x32x128xf32, #tpu.memory_space<vmem>>, vector<1x32x128xf32>
    %24 = vector.shape_cast %23 : vector<1x32x128xf32> to vector<32x128xf32>
    %25 = vector.shape_cast %22 : vector<32x128xf32> to vector<1x32x128xf32>
    tpu.vector_store %arg7[%c0_14, %c0_15, %c0_16], %25 {strides = array<i32>} : memref<1x32x128xf32, #tpu.memory_space<vmem>>, vector<1x32x128xf32>,
    return
  }
  func.func @transform_0(%arg0: i32, %arg1: i32) -> (i32, i32, i32, i32) {
    %c0_i32 = arith.constant 0 : i32
    %c0_i32_0 = arith.constant 0 : i32
    %c0_i32_1 = arith.constant 0 : i32
    return %arg0, %arg1, %c0_i32, %c0_i32_0 : i32, i32, i32, i32
  }
  func.func @transform_1(%arg0: i32, %arg1: i32) -> (i32, i32) {
    %c0_i32 = arith.constant 0 : i32
    %c0_i32_0 = arith.constant 0 : i32
    %c0_i32_1 = arith.constant 0 : i32
    return %c0_i32, %c0_i32_0 : i32, i32
  }
  func.func @transform_2(%arg0: i32, %arg1: i32) -> (i32, i32) {
    %c0_i32 = arith.constant 0 : i32
    %c0_i32_0 = arith.constant 0 : i32
    %c0_i32_1 = arith.constant 0 : i32
    return %c0_i32, %c0_i32_0 : i32, i32
  }
  func.func @transform_3(%arg0: i32, %arg1: i32) -> (i32, i32) {
    %c0_i32 = arith.constant 0 : i32
    %c0_i32_0 = arith.constant 0 : i32
    %c0_i32_1 = arith.constant 0 : i32
    return %c0_i32, %c0_i32_0 : i32, i32
  }
  func.func @transform_4(%arg0: i32, %arg1: i32) -> (i32, i32) {
    %c0_i32 = arith.constant 0 : i32
    %c0_i32_0 = arith.constant 0 : i32
    %c0_i32_1 = arith.constant 0 : i32
    return %c0_i32, %c0_i32_0 : i32, i32
  }
  func.func @transform_5(%arg0: i32, %arg1: i32) -> (i32, i32, i32) {
    %c0_i32 = arith.constant 0 : i32
    %c0_i32_0 = arith.constant 0 : i32
    return %arg0, %c0_i32, %arg1 : i32, i32, i32
  }
}

</mosaic_0001>

<llo_original>
// kernel: tpu_custom_call.1
$region0: #{tpu_custom_call.1}
  #allocation0 [shape = 'u32[]', space=smem, size = 0x4, offset = 0x4, fixed_abs, tag = 'smem constant byte address 0x4 - core index']
  #allocation1 [shape = 'u32[72,128]{1,0:T(1,128)}', space=vmem, size = 0x9000, scoped, tag = 'internal scratch']
  %s0 = inlined_call_operand.vmem [shape: f32[2,1,7,512], index: 0, kind: input, shape index: {}]
  %s1 = inlined_call_operand.vmem [shape: f32[16,7], index: 1, kind: input, shape index: {}]
  %s2 = inlined_call_operand.vmem [shape: f32[16,1], index: 2, kind: input, shape index: {}]
  %s3 = inlined_call_operand.vmem [shape: f32[32,16], index: 3, kind: input, shape index: {}]
  %s4 = inlined_call_operand.vmem [shape: f32[32,1], index: 4, kind: input, shape index: {}]
  %s5 = inlined_call_operand.hbm [shape: f32[2,32,128], index: 5, kind: output, shape index: {}]
  %s6 = sld [smem:[#allocation0]]
  $region53: #{tpu_custom_call.1} parent=0
    _
  %s8 = ssub.s32 1, %s6
  %s9 = scalar_select 0, %s8, %s6
  $region1: #{tpu_custom_call.1} parent=0
    #allocation2 [shape = 'u8[32768]{0}', space=vmem, size = 0x8000, scoped, tag = 'output window, operand 0']
    #allocation3 [shape = 's32[2]{0}', space=sflag, size = 0x8, scoped, tag = 'scoped memory for tpu_custom_call.1']
    %10 = vsyncpa [#allocation3], 0
    %s11 = scalar_lea.sflag [#allocation3], 1
    %12 = vsyncpa %s11, 0
    loop: start=0, step=1, limit=4
    $region2: #{tpu_custom_call.1} parent=1 // loop_pre_header
      _
    $region3: #{tpu_custom_call.1} parent=1 // loop_header
      %s14 = sphi 0, %s18
      %p15 = scmp.ge.s32.totalorder %s14, 4
      %s21 = sphi 0, %s33
      %s22 = sphi 0, %s29
      %s23 = sphi 0, %s21
      %s24 = sphi 0, %s22
      %s25 = sphi 0, %s23
      %s26 = sphi 0, %s24
      %s38 = sphi 0, %s40
      %s41 = sphi 0, %s38
      %s42 = sphi 0, %s41
      %s58 = sphi 0, %s42
      %s62 = sphi 0, %s62
      %s64 = sphi 0, %s62
      %s65 = sphi 0, %s64
      %s79 = sphi 0, %s65
      %s83 = sphi 0, %s83
      %s85 = sphi 0, %s83
      %s86 = sphi 0, %s85
      %s100 = sphi 0, %s86
      %s104 = sphi 0, %s104
      %s106 = sphi 0, %s104
      %s107 = sphi 0, %s106
      %s121 = sphi 0, %s107
      %s125 = sphi 0, %s125
      %s127 = sphi 0, %s125
      %s128 = sphi 0, %s127
      %s142 = sphi 0, %s128
      %s150 = sphi 0, %s152
      %s153 = sphi 0, %s150
      %s154 = sphi 0, %s153
      %s170 = sphi 0, %s154
    $region4: #{tpu_custom_call.1} parent=1 // loop_header_branch
      %17 = sbr.rel (%p15) target = $region8
    $region5: #{tpu_custom_call.1} parent=1 // loop_body
      %s19 = ssub.s32 %s14, 1
      %s20 = ssub.s32 %s14, 2
      %s27 = sadd.s32 1, %s22
      %p28 = scmp.ge.s32.totalorder %s27, 1
      %s29 = scalar_select %p28, 0, %s27
      %s30 = sadd.s32 1, %s21
      %s31 = scalar_select %p28, %s30, %s21
      %p32 = scmp.ge.s32.totalorder %s31, 2
      %s33 = scalar_select %p32, 0, %s31
      %s34 = ssub.s32 %s21, %s33
      %s35 = ssub.s32 %s22, %s29
      %s36 = sor.u32 %s34, %s35
      %p37 = scmp.eq.s32.totalorder %s36, 0
      %s39 = sadd.s32 %s38, 1
      %s40 = scalar_select %p37, %s38, %s39
      %p43 = pneg %p37
      %p44 = scmp.eq.s32.totalorder %s14, 1
      %p45 = por %p43, %p44
      %p46 = scmp.ne.s32.totalorder %s38, %s41
      %p47 = scmp.eq.s32.totalorder %s14, 0
      %p48 = por %p46, %p47
      %p49 = scmp.ne.s32.totalorder %s38, %s41
      %p50 = scmp.eq.s32.totalorder %s19, 1
      %p51 = por %p49, %p50
      %p52 = scmp.ne.s32.totalorder %s41, %s42
      %p53 = scmp.eq.s32.totalorder %s19, 0
      %p54 = por %p52, %p53
      %p55 = scmp.ne.s32.totalorder %s41, %s42
      %p56 = scmp.eq.s32.totalorder %s20, 1
      %p57 = por %p55, %p56
      %p59 = scmp.ne.s32.totalorder %s42, %s58
      %p60 = scmp.eq.s32.totalorder %s20, 0
      %p61 = por %p59, %p60
      %s63 = sadd.s32 %s62, 1
      %p66 = scmp.eq.s32.totalorder %s14, 1
      %p67 = scmp.ne.s32.totalorder %s62, %s64
      %p68 = scmp.eq.s32.totalorder %s14, 0
      %p69 = por %p67, %p68
      %p70 = scmp.ne.s32.totalorder %s62, %s64
      %p71 = scmp.eq.s32.totalorder %s19, 1
      %p72 = por %p70, %p71
      %p73 = scmp.ne.s32.totalorder %s64, %s65
      %p74 = scmp.eq.s32.totalorder %s19, 0
      %p75 = por %p73, %p74
      %p76 = scmp.ne.s32.totalorder %s64, %s65
      %p77 = scmp.eq.s32.totalorder %s20, 1
      %p78 = por %p76, %p77
      %p80 = scmp.ne.s32.totalorder %s65, %s79
      %p81 = scmp.eq.s32.totalorder %s20, 0
      %p82 = por %p80, %p81
      %s84 = sadd.s32 %s83, 1
      %p87 = scmp.eq.s32.totalorder %s14, 1
      %p88 = scmp.ne.s32.totalorder %s83, %s85
      %p89 = scmp.eq.s32.totalorder %s14, 0
      %p90 = por %p88, %p89
      %p91 = scmp.ne.s32.totalorder %s83, %s85
      %p92 = scmp.eq.s32.totalorder %s19, 1
      %p93 = por %p91, %p92
      %p94 = scmp.ne.s32.totalorder %s85, %s86
      %p95 = scmp.eq.s32.totalorder %s19, 0
      %p96 = por %p94, %p95
      %p97 = scmp.ne.s32.totalorder %s85, %s86
      %p98 = scmp.eq.s32.totalorder %s20, 1
      %p99 = por %p97, %p98
      %p101 = scmp.ne.s32.totalorder %s86, %s100
      %p102 = scmp.eq.s32.totalorder %s20, 0
      %p103 = por %p101, %p102
      %s105 = sadd.s32 %s104, 1
      %p108 = scmp.eq.s32.totalorder %s14, 1
      %p109 = scmp.ne.s32.totalorder %s104, %s106
      %p110 = scmp.eq.s32.totalorder %s14, 0
      %p111 = por %p109, %p110
      %p112 = scmp.ne.s32.totalorder %s104, %s106
      %p113 = scmp.eq.s32.totalorder %s19, 1
      %p114 = por %p112, %p113
      %p115 = scmp.ne.s32.totalorder %s106, %s107
      %p116 = scmp.eq.s32.totalorder %s19, 0
      %p117 = por %p115, %p116
      %p118 = scmp.ne.s32.totalorder %s106, %s107
      %p119 = scmp.eq.s32.totalorder %s20, 1
      %p120 = por %p118, %p119
      %p122 = scmp.ne.s32.totalorder %s107, %s121
      %p123 = scmp.eq.s32.totalorder %s20, 0
      %p124 = por %p122, %p123
      %s126 = sadd.s32 %s125, 1
      %p129 = scmp.eq.s32.totalorder %s14, 1
      %p130 = scmp.ne.s32.totalorder %s125, %s127
      %p131 = scmp.eq.s32.totalorder %s14, 0
      %p132 = por %p130, %p131
      %p133 = scmp.ne.s32.totalorder %s125, %s127
      %p134 = scmp.eq.s32.totalorder %s19, 1
      %p135 = por %p133, %p134
      %p136 = scmp.ne.s32.totalorder %s127, %s128
      %p137 = scmp.eq.s32.totalorder %s19, 0
      %p138 = por %p136, %p137
      %p139 = scmp.ne.s32.totalorder %s127, %s128
      %p140 = scmp.eq.s32.totalorder %s20, 1
      %p141 = por %p139, %p140
      %p143 = scmp.ne.s32.totalorder %s128, %s142
      %p144 = scmp.eq.s32.totalorder %s20, 0
      %p145 = por %p143, %p144
      %s146 = ssub.s32 %s21, %s33
      %s147 = ssub.s32 %s22, %s29
      %s148 = sor.u32 %s146, %s147
      %p149 = scmp.eq.s32.totalorder %s148, 0
      %s151 = sadd.s32 %s150, 1
      %s152 = scalar_select %p149, %s150, %s151
      %p155 = pneg %p149
      %p156 = scmp.eq.s32.totalorder %s14, 1
      %p157 = por %p155, %p156
      %p158 = scmp.ne.s32.totalorder %s150, %s153
      %p159 = scmp.eq.s32.totalorder %s14, 0
      %p160 = por %p158, %p159
      %p161 = scmp.ne.s32.totalorder %s150, %s153
      %p162 = scmp.eq.s32.totalorder %s19, 1
      %p163 = por %p161, %p162
      %p164 = scmp.ne.s32.totalorder %s153, %s154
      %p165 = scmp.eq.s32.totalorder %s19, 0
      %p166 = por %p164, %p165
      %p167 = scmp.ne.s32.totalorder %s153, %s154
      %p168 = scmp.eq.s32.totalorder %s20, 1
      %p169 = por %p167, %p168
      %p171 = scmp.ne.s32.totalorder %s154, %s170
      %p172 = scmp.eq.s32.totalorder %s20, 0
      %p173 = por %p171, %p172
      %p174 = scmp.le.s32.totalorder 1, %s14
      %p175 = scmp.lt.s32.totalorder %s14, 3
      %p176 = pnand %p174, %p175
      %p177 = pneg %p176
      // Predicated region
      $region9: #{tpu_custom_call.1} parent=5 // pred_check
        _
      $region10: #{tpu_custom_call.1} parent=5 // pred_check_branch
        %179 = sbr.rel (%p176) target = $region12
      $region11: #{tpu_custom_call.1} parent=5 // pred_region
        %s180 = ssub.s32 %s14, 1
        // Predicated region
        $region13: #{tpu_custom_call.1} parent=11 // pred_check
          %p181 = pneg %p75
        $region14: #{tpu_custom_call.1} parent=11 // pred_check_branch
          %183 = sbr.rel (%p181) target = $region16
        $region15: #{tpu_custom_call.1} parent=11 // pred_region
          _
        $region16: #{tpu_custom_call.1} parent=11 // pred_fallthru
          _
        // Predicated region
        $region17: #{tpu_custom_call.1} parent=11 // pred_check
          %p184 = pneg %p96
        $region18: #{tpu_custom_call.1} parent=11 // pred_check_branch
          %186 = sbr.rel (%p184) target = $region20
        $region19: #{tpu_custom_call.1} parent=11 // pred_region
          _
        $region20: #{tpu_custom_call.1} parent=11 // pred_fallthru
          _
        // Predicated region
        $region21: #{tpu_custom_call.1} parent=11 // pred_check
          %p187 = pneg %p117
        $region22: #{tpu_custom_call.1} parent=11 // pred_check_branch
          %189 = sbr.rel (%p187) target = $region24
        $region23: #{tpu_custom_call.1} parent=11 // pred_region
          _
        $region24: #{tpu_custom_call.1} parent=11 // pred_fallthru
          _
        // Predicated region
        $region25: #{tpu_custom_call.1} parent=11 // pred_check
          %p190 = pneg %p138
        $region26: #{tpu_custom_call.1} parent=11 // pred_check_branch
          %192 = sbr.rel (%p190) target = $region28
        $region27: #{tpu_custom_call.1} parent=11 // pred_region
          _
        $region28: #{tpu_custom_call.1} parent=11 // pred_fallthru
          _
      $region12: #{tpu_custom_call.1} parent=5 // pred_fallthru
        _
      %p193 = scmp.lt.s32.totalorder %s14, 2
      // Predicated region
      $region29: #{tpu_custom_call.1} parent=5 // pred_check
        %p194 = pneg %p193
      $region30: #{tpu_custom_call.1} parent=5 // pred_check_branch
        %196 = sbr.rel (%p194) target = $region32
      $region31: #{tpu_custom_call.1} parent=5 // pred_region
        // Predicated region
        $region33: #{tpu_custom_call.1} parent=31 // pred_check
          %p197 = pneg %p48
        $region34: #{tpu_custom_call.1} parent=31 // pred_check_branch
          %199 = sbr.rel (%p197) target = $region36
        $region35: #{tpu_custom_call.1} parent=31 // pred_region
          %p200 = scmp.lt.s32.totalorder %s21, 1
          %s201 = scalar_select %p200, %s21, 1
          %p202 = scmp.lt.s32.totalorder %s22, 0
          %s203 = scalar_select %p202, %s22, 0
          %s204 = smul.addr %s203, 4
          %s205 = smul.addr %s201, 4
          %s206 = sadd.s32 %s204, %s205
          %s207 = smul.addr %s206, 8
          %s208 = scalar_lea.vmem %s0, %s207
        $region36: #{tpu_custom_call.1} parent=31 // pred_fallthru
          _
      $region32: #{tpu_custom_call.1} parent=5 // pred_fallthru
        _
      %p209 = scmp.le.s32.totalorder 1, %s14
      %p210 = scmp.lt.s32.totalorder %s14, 3
      %p211 = pnand %p209, %p210
      %p212 = pneg %p211
      // Predicated region
      $region37: #{tpu_custom_call.1} parent=5 // pred_check
        _
      $region38: #{tpu_custom_call.1} parent=5 // pred_check_branch
        %214 = sbr.rel (%p211) target = $region40
      $region39: #{tpu_custom_call.1} parent=5 // pred_region
        %s215 = ssub.s32 %s14, 1
        %p216 = scmp.lt.s32.totalorder %s23, 1
        %s217 = scalar_select %p216, %s23, 1
        %p218 = scmp.lt.s32.totalorder %s24, 0
        %s219 = scalar_select %p218, %s24, 0
        %s220 = smul.addr %s219, 4
        %s221 = smul.addr %s217, 4
        %s222 = sadd.s32 %s220, %s221
        %s223 = smul.addr %s222, 8
        %s224 = scalar_lea.vmem %s0, %s223
        %p225 = pneg %p54
        %p226 = pneg %p51
        %p227 = pneg %p75
        %p228 = pneg %p72
        %p229 = pneg %p96
        %p230 = pneg %p93
        %p231 = pneg %p117
        %p232 = pneg %p114
        %p233 = pneg %p138
        %p234 = pneg %p135
        %p235 = pneg %p166
        %p236 = pneg %p163
        %s237 = sand.u32 %s153, 1
        %s238 = scalar_lea.sflag [#allocation3], %s237
        %s239 = sand.u32 %s153, 1
        %s240 = smul.addr %s239, 32
        %s241 = scalar_lea.vmem [#allocation2], %s240
        %p242 = scmp.lt.s32.totalorder %s23, 1
        %s243 = scalar_select %p242, %s23, 1
        %p244 = scmp.lt.s32.totalorder %s24, 0
        %s245 = scalar_select %p244, %s24, 0
        %s246 = smul.addr %s245, 4
        %s247 = smul.addr %s243, 4
        %s248 = sadd.s32 %s246, %s247
        %s249 = smul.addr %s248, 8
        %s250 = scalar_lea.vmem %s0, %s249
        %v251 = vld [vmem:[%s250] sm:$0x7f]
        %v252 = vld [vmem:[%s250 + $0x8] sm:$0x7f]
        %v253 = vld [vmem:[%s250 + $0x10] sm:$0x7f]
        %v254 = vld [vmem:[%s250 + $0x18] sm:$0x7f]
        %v255 = vld [vmem:[%s1] sm:$0xff]
        %v256 = vld [vmem:[%s1 + $0x8] sm:$0xff]
        %v257 = vld [vmem:[%s2] sm:$0xff]
        %v258 = vld [vmem:[%s2 + $0x8] sm:$0xff]
        %260 = vset.pattern.permute.xlu0 0
        %261 = vperm.xlu0 %260, %v257
        %v262 = vpop.permute.xlu0 %261
        %265 = vset.pattern.permute.xlu0 0
        %266 = vperm.xlu0 %265, %v258
        %v267 = vpop.permute.xlu0 %266
        %vm269 = vcmask 56320
        %v271 = vsel %vm269, %v255, 0
        %v274 = vsel %vm269, %v256, 0
        %vm276 = vcmask 1046528
        %v278 = vsel %vm276, %v251, 0
        %v281 = vsel %vm276, %v252, 0
        %v284 = vsel %vm276, %v253, 0
        %v287 = vsel %vm276, %v254, 0
        %289 = vmatpush.msra.mxu0 0.0
        %290 = vmatpush.msra.mxu0 0.0
        %291 = vmatpush.msra.mxu0 0.0
        %292 = vmatpush.msra.mxu0 0.0
        %293 = vmatpush.msra.mxu0 0.0
        %294 = vmatpush.msra.mxu0 0.0
        %295 = vmatpush.msra.mxu0 0.0
        %296 = vmatpush.msra.mxu0 0.0
        %297 = vmatpush.msra.mxu0 0.0
        %298 = vmatpush.msra.mxu0 0.0
        %299 = vmatpush.msra.mxu0 0.0
        %300 = vmatpush.msra.mxu0 0.0
        %301 = vmatpush.msra.mxu0 0.0
        %302 = vmatpush.msra.mxu0 0.0
        %303 = vmatpush.msra.mxu0 0.0
        %304 = vmatpush.msra.mxu0 %v278
        %305 = vmatmul.f32.gmra.mxu0 %v271
        %v306 = vpop.f32.mrf.mxu0
        %v307 = vadd.f32 %v262, %v306
        %308 = vmatmul.f32.gmra.mxu0 %v274
        %v309 = vpop.f32.mrf.mxu0
        %v310 = vadd.f32 %v267, %v309
        %311 = vdwg.mxu0
        %312 = vmatpush.msra.mxu0 0.0
        %313 = vmatpush.msra.mxu0 0.0
        %314 = vmatpush.msra.mxu0 0.0
        %315 = vmatpush.msra.mxu0 0.0
        %316 = vmatpush.msra.mxu0 0.0
        %317 = vmatpush.msra.mxu0 0.0
        %318 = vmatpush.msra.mxu0 0.0
        %319 = vmatpush.msra.mxu0 0.0
        %320 = vmatpush.msra.mxu0 0.0
        %321 = vmatpush.msra.mxu0 0.0
        %322 = vmatpush.msra.mxu0 0.0
        %323 = vmatpush.msra.mxu0 0.0
        %324 = vmatpush.msra.mxu0 0.0
        %325 = vmatpush.msra.mxu0 0.0
        %326 = vmatpush.msra.mxu0 0.0
        %327 = vmatpush.msra.mxu0 %v281
        %328 = vmatmul.f32.gmra.mxu0 %v271
        %v329 = vpop.f32.mrf.mxu0
        %v330 = vadd.f32 %v262, %v329
        %331 = vmatmul.f32.gmra.mxu0 %v274
        %v332 = vpop.f32.mrf.mxu0
        %v333 = vadd.f32 %v267, %v332
        %334 = vdwg.mxu0
        %335 = vmatpush.msra.mxu0 0.0
        %336 = vmatpush.msra.mxu0 0.0
        %337 = vmatpush.msra.mxu0 0.0
        %338 = vmatpush.msra.mxu0 0.0
        %339 = vmatpush.msra.mxu0 0.0
        %340 = vmatpush.msra.mxu0 0.0
        %341 = vmatpush.msra.mxu0 0.0
        %342 = vmatpush.msra.mxu0 0.0
        %343 = vmatpush.msra.mxu0 0.0
        %344 = vmatpush.msra.mxu0 0.0
        %345 = vmatpush.msra.mxu0 0.0
        %346 = vmatpush.msra.mxu0 0.0
        %347 = vmatpush.msra.mxu0 0.0
        %348 = vmatpush.msra.mxu0 0.0
        %349 = vmatpush.msra.mxu0 0.0
        %350 = vmatpush.msra.mxu0 %v284
        %351 = vmatmul.f32.gmra.mxu0 %v271
        %v352 = vpop.f32.mrf.mxu0
        %v353 = vadd.f32 %v262, %v352
        %354 = vmatmul.f32.gmra.mxu0 %v274
        %v355 = vpop.f32.mrf.mxu0
        %v356 = vadd.f32 %v267, %v355
        %357 = vdwg.mxu0
        %358 = vmatpush.msra.mxu0 0.0
        %359 = vmatpush.msra.mxu0 0.0
        %360 = vmatpush.msra.mxu0 0.0
        %361 = vmatpush.msra.mxu0 0.0
        %362 = vmatpush.msra.mxu0 0.0
        %363 = vmatpush.msra.mxu0 0.0
        %364 = vmatpush.msra.mxu0 0.0
        %365 = vmatpush.msra.mxu0 0.0
        %366 = vmatpush.msra.mxu0 0.0
        %367 = vmatpush.msra.mxu0 0.0
        %368 = vmatpush.msra.mxu0 0.0
        %369 = vmatpush.msra.mxu0 0.0
        %370 = vmatpush.msra.mxu0 0.0
        %371 = vmatpush.msra.mxu0 0.0
        %372 = vmatpush.msra.mxu0 0.0
        %373 = vmatpush.msra.mxu0 %v287
        %374 = vmatmul.f32.gmra.mxu0 %v271
        %v375 = vpop.f32.mrf.mxu0
        %v376 = vadd.f32 %v262, %v375
        %377 = vmatmul.f32.gmra.mxu0 %v274
        %v378 = vpop.f32.mrf.mxu0
        %v379 = vadd.f32 %v267, %v378
        %380 = vdwg.mxu0
        %v381 = vmax.f32 %v307, 0.0
        %v382 = vmax.f32 %v330, 0.0
        %v383 = vmax.f32 %v353, 0.0
        %v384 = vmax.f32 %v376, 0.0
        %v385 = vmax.f32 %v310, 0.0
        %v386 = vmax.f32 %v333, 0.0
        %v387 = vmax.f32 %v356, 0.0
        %v388 = vmax.f32 %v379, 0.0
        %v389 = vld [vmem:[%s3] sm:$0xff]
        %v390 = vld [vmem:[%s3 + $0x8] sm:$0xff]
        %v391 = vld [vmem:[%s3 + $0x10] sm:$0xff]
        %v392 = vld [vmem:[%s3 + $0x18] sm:$0xff]
        %v393 = vld [vmem:[%s4] sm:$0xff]
        %v394 = vld [vmem:[%s4 + $0x8] sm:$0xff]
        %v395 = vld [vmem:[%s4 + $0x10] sm:$0xff]
        %v396 = vld [vmem:[%s4 + $0x18] sm:$0xff]
        %398 = vset.pattern.permute.xlu0 0
        %399 = vperm.xlu0 %398, %v393
        %v400 = vpop.permute.xlu0 %399
        %403 = vset.pattern.permute.xlu0 0
        %404 = vperm.xlu0 %403, %v394
        %v405 = vpop.permute.xlu0 %404
        %408 = vset.pattern.permute.xlu0 0
        %409 = vperm.xlu0 %408, %v395
        %v410 = vpop.permute.xlu0 %409
        %413 = vset.pattern.permute.xlu0 0
        %414 = vperm.xlu0 %413, %v396
        %v415 = vpop.permute.xlu0 %414
        %vm417 = vcmask 130048
        %v419 = vsel %vm417, %v389, 0
        %v422 = vsel %vm417, %v390, 0
        %v425 = vsel %vm417, %v391, 0
        %v428 = vsel %vm417, %v392, 0
        %430 = vmatpush.msra.mxu0 0.0
        %431 = vmatpush.msra.mxu0 0.0
        %432 = vmatpush.msra.mxu0 0.0
        %433 = vmatpush.msra.mxu0 0.0
        %434 = vmatpush.msra.mxu0 0.0
        %435 = vmatpush.msra.mxu0 0.0
        %436 = vmatpush.msra.mxu0 0.0
        %437 = vmatpush.msra.mxu0 0.0
        %438 = vmatpush.msra.mxu0 0.0
        %439 = vmatpush.msra.mxu0 0.0
        %440 = vmatpush.msra.mxu0 0.0
        %441 = vmatpush.msra.mxu0 0.0
        %442 = vmatpush.msra.mxu0 0.0
        %443 = vmatpush.msra.mxu0 0.0
        %444 = vmatpush.msra.mxu0 %v385
        %445 = vmatpush.msra.mxu0 %v381
        %446 = vmatmul.f32.gmra.mxu0 %v419
        %v447 = vpop.f32.mrf.mxu0
        %v448 = vadd.f32 %v400, %v447
        %449 = vmatmul.f32.gmra.mxu0 %v422
        %v450 = vpop.f32.mrf.mxu0
        %v451 = vadd.f32 %v405, %v450
        %452 = vmatmul.f32.gmra.mxu0 %v425
        %v453 = vpop.f32.mrf.mxu0
        %v454 = vadd.f32 %v410, %v453
        %455 = vmatmul.f32.gmra.mxu0 %v428
        %v456 = vpop.f32.mrf.mxu0
        %v457 = vadd.f32 %v415, %v456
        %458 = vdwg.mxu0
        %459 = vmatpush.msra.mxu0 0.0
        %460 = vmatpush.msra.mxu0 0.0
        %461 = vmatpush.msra.mxu0 0.0
        %462 = vmatpush.msra.mxu0 0.0
        %463 = vmatpush.msra.mxu0 0.0
        %464 = vmatpush.msra.mxu0 0.0
        %465 = vmatpush.msra.mxu0 0.0
        %466 = vmatpush.msra.mxu0 0.0
        %467 = vmatpush.msra.mxu0 0.0
        %468 = vmatpush.msra.mxu0 0.0
        %469 = vmatpush.msra.mxu0 0.0
        %470 = vmatpush.msra.mxu0 0.0
        %471 = vmatpush.msra.mxu0 0.0
        %472 = vmatpush.msra.mxu0 0.0
        %473 = vmatpush.msra.mxu0 %v386
        %474 = vmatpush.msra.mxu0 %v382
        %475 = vmatmul.f32.gmra.mxu0 %v419
        %v476 = vpop.f32.mrf.mxu0
        %v477 = vadd.f32 %v400, %v476
        %478 = vmatmul.f32.gmra.mxu0 %v422
        %v479 = vpop.f32.mrf.mxu0
        %v480 = vadd.f32 %v405, %v479
        %481 = vmatmul.f32.gmra.mxu0 %v425
        %v482 = vpop.f32.mrf.mxu0
        %v483 = vadd.f32 %v410, %v482
        %484 = vmatmul.f32.gmra.mxu0 %v428
        %v485 = vpop.f32.mrf.mxu0
        %v486 = vadd.f32 %v415, %v485
        %487 = vdwg.mxu0
        %488 = vmatpush.msra.mxu0 0.0
        %489 = vmatpush.msra.mxu0 0.0
        %490 = vmatpush.msra.mxu0 0.0
        %491 = vmatpush.msra.mxu0 0.0
        %492 = vmatpush.msra.mxu0 0.0
        %493 = vmatpush.msra.mxu0 0.0
        %494 = vmatpush.msra.mxu0 0.0
        %495 = vmatpush.msra.mxu0 0.0
        %496 = vmatpush.msra.mxu0 0.0
        %497 = vmatpush.msra.mxu0 0.0
        %498 = vmatpush.msra.mxu0 0.0
        %499 = vmatpush.msra.mxu0 0.0
        %500 = vmatpush.msra.mxu0 0.0
        %501 = vmatpush.msra.mxu0 0.0
        %502 = vmatpush.msra.mxu0 %v387
        %503 = vmatpush.msra.mxu0 %v383
        %504 = vmatmul.f32.gmra.mxu0 %v419
        %v505 = vpop.f32.mrf.mxu0
        %v506 = vadd.f32 %v400, %v505
        %507 = vmatmul.f32.gmra.mxu0 %v422
        %v508 = vpop.f32.mrf.mxu0
        %v509 = vadd.f32 %v405, %v508
        %510 = vmatmul.f32.gmra.mxu0 %v425
        %v511 = vpop.f32.mrf.mxu0
        %v512 = vadd.f32 %v410, %v511
        %513 = vmatmul.f32.gmra.mxu0 %v428
        %v514 = vpop.f32.mrf.mxu0
        %v515 = vadd.f32 %v415, %v514
        %516 = vdwg.mxu0
        %517 = vmatpush.msra.mxu0 0.0
        %518 = vmatpush.msra.mxu0 0.0
        %519 = vmatpush.msra.mxu0 0.0
        %520 = vmatpush.msra.mxu0 0.0
        %521 = vmatpush.msra.mxu0 0.0
        %522 = vmatpush.msra.mxu0 0.0
        %523 = vmatpush.msra.mxu0 0.0
        %524 = vmatpush.msra.mxu0 0.0
        %525 = vmatpush.msra.mxu0 0.0
        %526 = vmatpush.msra.mxu0 0.0
        %527 = vmatpush.msra.mxu0 0.0
        %528 = vmatpush.msra.mxu0 0.0
        %529 = vmatpush.msra.mxu0 0.0
        %530 = vmatpush.msra.mxu0 0.0
        %531 = vmatpush.msra.mxu0 %v388
        %532 = vmatpush.msra.mxu0 %v384
        %533 = vmatmul.f32.gmra.mxu0 %v419
        %v534 = vpop.f32.mrf.mxu0
        %v535 = vadd.f32 %v400, %v534
        %536 = vmatmul.f32.gmra.mxu0 %v422
        %v537 = vpop.f32.mrf.mxu0
        %v538 = vadd.f32 %v405, %v537
        %539 = vmatmul.f32.gmra.mxu0 %v425
        %v540 = vpop.f32.mrf.mxu0
        %v541 = vadd.f32 %v410, %v540
        %542 = vmatmul.f32.gmra.mxu0 %v428
        %v543 = vpop.f32.mrf.mxu0
        %v544 = vadd.f32 %v415, %v543
        %545 = vdwg.mxu0
        %v546 = vmax.f32 %v448, 0.0
        %v547 = vmax.f32 %v477, 0.0
        %v548 = vmax.f32 %v506, 0.0
        %v549 = vmax.f32 %v535, 0.0
        %v550 = vmax.f32 %v451, 0.0
        %v551 = vmax.f32 %v480, 0.0
        %v552 = vmax.f32 %v509, 0.0
        %v553 = vmax.f32 %v538, 0.0
        %v554 = vmax.f32 %v454, 0.0
        %v555 = vmax.f32 %v483, 0.0
        %v556 = vmax.f32 %v512, 0.0
        %v557 = vmax.f32 %v541, 0.0
        %v558 = vmax.f32 %v457, 0.0
        %v559 = vmax.f32 %v486, 0.0
        %v560 = vmax.f32 %v515, 0.0
        %v561 = vmax.f32 %v544, 0.0
        %v562 = vmax.f32 %v546, %v547
        %v563 = vmax.f32 %v550, %v551
        %v564 = vmax.f32 %v554, %v555
        %v565 = vmax.f32 %v558, %v559
        %v566 = vmax.f32 %v548, %v549
        %v567 = vmax.f32 %v552, %v553
        %v568 = vmax.f32 %v556, %v557
        %v569 = vmax.f32 %v560, %v561
        %v570 = vmax.f32 %v562, %v566
        %v571 = vmax.f32 %v563, %v567
        %v572 = vmax.f32 %v564, %v568
        %v573 = vmax.f32 %v565, %v569
        %574 = vst [vmem:[%s241] sm:$0xff] %v570
        %575 = vst [vmem:[%s241 + $0x8] sm:$0xff] %v571
        %576 = vst [vmem:[%s241 + $0x10] sm:$0xff] %v572
        %577 = vst [vmem:[%s241 + $0x18] sm:$0xff] %v573
        %s578 = sand.u32 %s153, 1
        %s579 = scalar_lea.sflag [#allocation3], %s578
        %s580 = sand.u32 %s153, 1
        %s581 = smul.addr %s580, 32
        %s582 = scalar_lea.vmem [#allocation2], %s581
        // Predicated region
        $region41: #{tpu_custom_call.1} parent=39 // pred_check
          %p583 = pneg %p163
        $region42: #{tpu_custom_call.1} parent=39 // pred_check_branch
          %585 = sbr.rel (%p583) target = $region44
        $region43: #{tpu_custom_call.1} parent=39 // pred_region
          %587 = vsyncadd %s579, 0
          %s588 = smul.addr %s23, 4
          %s589 = sadd.s32 %s24, %s588
          %s590 = smul.addr %s589, 8
          %s591 = scalar_lea.hbm %s5, %s590
          %s592 = sshll.u32 %s582, 4
          %s593 = int_to_ptr.vmem [resolvable:$true] %s592
          %s594 = sshll.u32 %s591, 4
          %s595 = int_to_ptr.hbm [resolvable:$true] %s594
          %600 = dma.vmem_to_hbm [thread:$0]  %s593, 512, %s595, %s579, 128, 128, 8
        $region44: #{tpu_custom_call.1} parent=39 // pred_fallthru
          _
      $region40: #{tpu_custom_call.1} parent=5 // pred_fallthru
        _
      %p601 = scmp.le.s32.totalorder 2, %s14
      // Predicated region
      $region45: #{tpu_custom_call.1} parent=5 // pred_check
        %p602 = pneg %p601
      $region46: #{tpu_custom_call.1} parent=5 // pred_check_branch
        %604 = sbr.rel (%p602) target = $region48
      $region47: #{tpu_custom_call.1} parent=5 // pred_region
        %s605 = ssub.s32 %s14, 2
        // Predicated region
        $region49: #{tpu_custom_call.1} parent=47 // pred_check
          %p606 = pneg %p169
        $region50: #{tpu_custom_call.1} parent=47 // pred_check_branch
          %608 = sbr.rel (%p606) target = $region52
        $region51: #{tpu_custom_call.1} parent=47 // pred_region
          %s609 = sand.u32 %s154, 1
          %s610 = scalar_lea.sflag [#allocation3], %s609
          %s611 = sand.u32 %s154, 1
          %s612 = smul.addr %s611, 32
          %s613 = scalar_lea.vmem [#allocation2], %s612
          %615 = dma.done %s610, 512
        $region52: #{tpu_custom_call.1} parent=47 // pred_fallthru
          _
      $region48: #{tpu_custom_call.1} parent=5 // pred_fallthru
        _
    $region6: #{tpu_custom_call.1} parent=1 // loop_footer
      %s18 = sadd.s32 1, %s14
    $region7: #{tpu_custom_call.1} parent=1 // loop_footer_branch
      %13 = sbr.rel target = $region3
    $region8: #{tpu_custom_call.1} parent=1 // loop_exit
      _
    %616 = vsyncpa [#allocation3], 1
    %s617 = scalar_lea.sflag [#allocation3], 1
    %618 = vsyncpa %s617, 1

</llo_original>
